<compile_context>
chip_gen: v7x
topology: tpu7x:2x2x1
jax: 0.10.0
libtpu: 0.0.40
codegen_flags: <defaults>
</compile_context>

<pallas_src>
import jax
import jax.numpy as jnp
from jax import lax
from jax.experimental import pallas as pl
from jax.experimental.pallas import tpu as pltpu

DILATIONS = (1, 3, 5)
KSIZE = 3
EPS = 1e-5
LANE = 128


def make_kernel(C, T, Tp, dilations):
    needs_mask = (Tp != T)
    inv_T = 1.0 / float(T)

    def kernel(x_ref, h_ref, w1_ref, w2_ref, b_ref, al_ref, o_ref, xs_ref):
        i = pl.program_id(1)                      # res-block index
        lane = lax.broadcasted_iota(jnp.int32, (C, Tp), 1)
        valid = lane < T                          # only used when needs_mask

        @pl.when(i == 0)
        def _init():
            # Residual seed; stays resident in the output block across the
            # (arbitrary) block axis.
            o_ref[0] = x_ref[0]

        hi = h_ref[0, 0]                          # (4C,1): g1 | b1 | g2 | b2
        al = al_ref[0]                            # (4C,1): a1 | 1/a1 | a2 | 1/a2
        bb = b_ref[0]                             # (2C,1): conv1 bias | conv2 bias

        def adain_snake(v, gamma, beta, a_col, inv_a):
            # Instance norm with two-pass (centered) variance + snake.
            vm = jnp.where(valid, v, 0.0) if needs_mask else v
            mean = jnp.sum(vm, axis=-1, keepdims=True) * inv_T
            c = v - mean
            cm = jnp.where(valid, c, 0.0) if needs_mask else c
            var = jnp.sum(cm * cm, axis=-1, keepdims=True) * inv_T
            scale = (1.0 + gamma) * lax.rsqrt(var + EPS)
            y = scale * c + beta
            s_ay = jnp.sin(a_col * y)             # snake: y + (1/a) sin(a y)^2
            y = y + inv_a * (s_ay * s_ay)
            # Zero padded lanes so they act as the conv's zero padding.
            return jnp.where(valid, y, 0.0) if needs_mask else y

        def build_taps(v, d):
            # Tap-fused "same" dilated conv operand: rows [x[t-d] | x[t] | x[t+d]],
            # built with XLU rolls (pltpu.roll matches jnp.roll: roll(v,s)[t]=v[t-s])
            # and masked at the <d / >=T-d edge lanes, stored in the MXU dtype.
            past = pltpu.roll(v, d, 1)            # x[t - d]
            fut = pltpu.roll(v, Tp - d, 1)        # x[t + d]
            xs_ref[:C] = jnp.where(lane < d, 0.0, past).astype(xs_ref.dtype)
            xs_ref[C:2 * C] = v.astype(xs_ref.dtype)
            xs_ref[2 * C:] = jnp.where(lane >= T - d, 0.0, fut).astype(xs_ref.dtype)

        # ---- AdaIN -> snake -> dilated conv1 (dilation depends on block) ----
        y1 = adain_snake(o_ref[0], hi[:C], hi[C:2 * C], al[:C], al[C:2 * C])
        for bi, d in enumerate(dilations):
            @pl.when(i == bi)
            def _taps(d=d):
                build_taps(y1, d)
        t1 = jnp.dot(w1_ref[0], xs_ref[...],
                     preferred_element_type=jnp.float32) + bb[:C]

        # ---- AdaIN -> snake -> conv2 (dilation 1) -> residual add -----------
        y2 = adain_snake(t1, hi[2 * C:3 * C], hi[3 * C:],
                         al[2 * C:3 * C], al[3 * C:])
        build_taps(y2, 1)
        t2 = jnp.dot(w2_ref[0], xs_ref[...],
                     preferred_element_type=jnp.float32) + bb[C:]
        if needs_mask:
            t2 = jnp.where(valid, t2, 0.0)        # keep padded residual lanes at 0
        o_ref[0] = o_ref[0] + t2

    return kernel


def adain_resblock1_pallas(x, s, params, *, use_bf16_matmul=True):
    B, C, T = x.shape
    nblk = len(DILATIONS)
    Tp = ((T + LANE - 1) // LANE) * LANE
    mxu_dtype = jnp.bfloat16 if use_bf16_matmul else jnp.float32

    # ---- layout glue + hoisted tiny FC matmuls (no (C,T) compute here) -----
    x_in = jnp.pad(x, ((0, 0), (0, 0), (0, Tp - T))) if Tp != T else x

    # All six AdaIN affines for the whole batch in two small XLA matmuls.
    # Per-(batch, block) column layout: [gamma1 | beta1 | gamma2 | beta2].
    h1 = jnp.einsum("bs,ncs->bnc", s, params["f1w"]) + params["f1b"][None]
    h2 = jnp.einsum("bs,ncs->bnc", s, params["f2w"]) + params["f2b"][None]
    hcol = jnp.concatenate([h1, h2], axis=-1).astype(jnp.float32)[..., None]

    def fuse_taps(w):   # (nblk, Co, Ci, K) -> (nblk, Co, K*Ci), tap-major cols
        wt = jnp.transpose(w, (0, 1, 3, 2))
        return wt.reshape(nblk, C, KSIZE * C).astype(mxu_dtype)

    w1f = fuse_taps(params["w1"])
    w2f = fuse_taps(params["w2"])
    bcol = jnp.concatenate([params["b1"], params["b2"]], axis=1)[:, :, None]
    alph = jnp.concatenate(
        [params["a1"], 1.0 / params["a1"], params["a2"], 1.0 / params["a2"]],
        axis=1)[:, :, None]

    kernel = make_kernel(C, T, Tp, DILATIONS)

    # VMEM budget from real (lane/sublane padded) tile sizes, double-buffered,
    # capped well under v7x's 64 MiB physical VMEM.
    itm = jnp.dtype(mxu_dtype).itemsize

    def col_bytes(rows):          # (rows, 1) f32 column tile, padded to (8,128)
        return ((rows + 7) // 8) * 8 * LANE * 4

    est = (4 * C * Tp * 4                                   # x + out blocks
           + 2 * 2 * C * KSIZE * C * itm                    # w1f + w2f blocks
           + 2 * (col_bytes(4 * C) + col_bytes(2 * C) + col_bytes(4 * C))
           + KSIZE * C * Tp * itm)                          # tap scratch
    vmem_limit = int(min(48 * 2 ** 20, max(16 * 2 ** 20, 2 * est)))

    # Only alias when x_in is a fresh (padded) buffer; otherwise donation
    # would invalidate the caller's array.
    aliases = {0: 0} if Tp != T else {}

    out = pl.pallas_call(
        kernel,
        out_shape=jax.ShapeDtypeStruct((B, C, Tp), jnp.float32),
        grid_spec=pltpu.PrefetchScalarGridSpec(
            num_scalar_prefetch=0,
            grid=(B, nblk),
            in_specs=[
                pl.BlockSpec((1, C, Tp), lambda b, i: (b, 0, 0)),           # x
                pl.BlockSpec((1, 1, 4 * C, 1), lambda b, i: (b, i, 0, 0)),  # gamma/beta
                pl.BlockSpec((1, C, KSIZE * C), lambda b, i: (i, 0, 0)),    # w1 (tap-fused)
                pl.BlockSpec((1, C, KSIZE * C), lambda b, i: (i, 0, 0)),    # w2 (tap-fused)
                pl.BlockSpec((1, 2 * C, 1), lambda b, i: (i, 0, 0)),        # conv biases
                pl.BlockSpec((1, 4 * C, 1), lambda b, i: (i, 0, 0)),        # alpha, 1/alpha
            ],
            out_specs=pl.BlockSpec((1, C, Tp), lambda b, i: (b, 0, 0)),
            scratch_shapes=[pltpu.VMEM((KSIZE * C, Tp), mxu_dtype)]),
        compiler_params=pltpu.CompilerParams(
            dimension_semantics=("parallel", "arbitrary"),
            vmem_limit_bytes=vmem_limit),
        input_output_aliases=aliases,
    )(x_in, hcol, w1f, w2f, bcol, alph)

    return out[:, :, :T] if Tp != T else out


def adain_resblock1_reference(x, s, params):
    """Pure-JAX reference mirroring the PyTorch forward exactly."""
    B, C, T = x.shape

    def adain(v, w, b):
        h = s @ w.T + b                         # (B, 2C)
        gamma = h[:, :C, None]
        beta = h[:, C:, None]
        mean = v.mean(-1, keepdims=True)
        var = ((v - mean) ** 2).mean(-1, keepdims=True)
        nrm = (v - mean) / jnp.sqrt(var + EPS)
        return (1.0 + gamma) * nrm + beta

    def conv(v, w, b, d):
        y = lax.conv_general_dilated(
            v, w, window_strides=(1,), padding=[(d, d)], rhs_dilation=(d,),
            dimension_numbers=("NCH", "OIH", "NCH"))
        return y + b[None, :, None]

    out = x
    for i, d in enumerate(DILATIONS):
        xt = adain(out, params["f1w"][i], params["f1b"][i])
        a = params["a1"][i][None, :, None]
        xt = xt + (1.0 / a) * jnp.sin(a * xt) ** 2
        xt = conv(xt, params["w1"][i], params["b1"][i], d)
        xt = adain(xt, params["f2w"][i], params["f2b"][i])
        a = params["a2"][i][None, :, None]
        xt = xt + (1.0 / a) * jnp.sin(a * xt) ** 2
        xt = conv(xt, params["w2"][i], params["b2"][i], 1)
        out = xt + out
    return out


def init_params(key, channels, style_dim):
    ks = jax.random.split(key, 8)
    C, S, nblk, K = channels, style_dim, len(DILATIONS), KSIZE
    params = {
        "w1": 0.01 * jax.random.normal(ks[0], (nblk, C, C, K), jnp.float32),
        "b1": 0.05 * jax.random.normal(ks[1], (nblk, C), jnp.float32),
        "w2": 0.01 * jax.random.normal(ks[2], (nblk, C, C, K), jnp.float32),
        "b2": 0.05 * jax.random.normal(ks[3], (nblk, C), jnp.float32),
        "f1w": (1.0 / jnp.sqrt(S)) * jax.random.normal(
            ks[4], (nblk, 2 * C, S), jnp.float32),
        "f1b": 0.1 * jax.random.normal(ks[5], (nblk, 2 * C), jnp.float32),
        "f2w": (1.0 / jnp.sqrt(S)) * jax.random.normal(
            ks[6], (nblk, 2 * C, S), jnp.float32),
        "f2b": 0.1 * jax.random.normal(ks[7], (nblk, 2 * C), jnp.float32),
        "a1": jnp.ones((nblk, C), jnp.float32),
        "a2": jnp.ones((nblk, C), jnp.float32),
    }
    return params


if __name__ == "__main__":
    B, C, T, S = 2, 8, 64, 16

    key = jax.random.PRNGKey(0)
    kx, ks_, kp = jax.random.split(key, 3)
    x = jax.random.normal(kx, (B, C, T), jnp.float32)
    s = jax.random.normal(ks_, (B, S), jnp.float32)
    params = init_params(kp, C, S)

    ref = jax.block_until_ready(adain_resblock1_reference(x, s, params))

    # f32-MXU path: tight tolerance vs. the PyTorch-equivalent reference.
    out_f32 = jax.block_until_ready(
        adain_resblock1_pallas(x, s, params, use_bf16_matmul=False))
    assert out_f32.shape == (B, C, T)
    assert jnp.allclose(out_f32, ref, atol=2e-4, rtol=2e-4), (
        float(jnp.max(jnp.abs(out_f32 - ref))))

    # Default path: bf16 MXU operands; stats / affine / snake / residual f32.
    out_bf16 = jax.block_until_ready(adain_resblock1_pallas(x, s, params))
    assert out_bf16.shape == (B, C, T)
    assert jnp.allclose(out_bf16, ref, atol=2e-2, rtol=2e-2), (
        float(jnp.max(jnp.abs(out_bf16 - ref))))

    print("KERNEL_OK")
</pallas_src>

<mosaic_0001>
module attributes {stable_mosaic.version = 11 : i64} {
  func.func @kernel(%arg0: i32, %arg1: i32, %arg2: memref<1x8x128xf32, #tpu.memory_space<vmem>>, %arg3: memref<1x1x32x1xf32, #tpu.memory_space<vmem>>, %arg4: memref<1x8x24xf32, #tpu.memory_space<vmem>>, %arg5: memref<1x8x24xf32, #tpu.memory_space<vmem>>, %arg6: memref<1x16x1xf32, #tpu.memory_space<vmem>>, %arg7: memref<1x32x1xf32, #tpu.memory_space<vmem>>, %arg8: memref<1x8x128xf32, #tpu.memory_space<vmem>>, %arg9: memref<24x128xf32, #tpu.memory_space<vmem>>) attributes {dimension_semantics = [#tpu.dimension_semantics<parallel>, #tpu.dimension_semantics<arbitrary>], iteration_bounds = array<i64: 2, 3>, scalar_prefetch = 0 : i64, scratch_operands = 1 : i64, tpu.core_type = #tpu.core_type<tc>, window_params = [{transform_indices = @transform_0, window_bounds = array<i64: 1, 8, 128>}, {transform_indices = @transform_1, window_bounds = array<i64: 1, 1, 32, 1>}, {transform_indices = @transform_2, window_bounds = array<i64: 1, 8, 24>}, {transform_indices = @transform_3, window_bounds = array<i64: 1, 8, 24>}, {transform_indices = @transform_4, window_bounds = array<i64: 1, 16, 1>}, {transform_indices = @transform_5, window_bounds = array<i64: 1, 32, 1>}, {transform_indices = @transform_6, window_bounds = array<i64: 1, 8, 128>}]} {
    %0 = tpu.iota {dimensions = array<i32: 1>} : vector<8x128xi32>
    %c64_i32 = arith.constant 64 : i32
    %1 = vector.broadcast %c64_i32 : i32 to vector<8x128xi32>
    %2 = arith.cmpi slt, %0, %1 : vector<8x128xi32>
    %c0_i32 = arith.constant 0 : i32
    %3 = arith.cmpi eq, %arg1, %c0_i32 : i32
    %4 = arith.extui %3 : i1 to i32
    %c0_i32_0 = arith.constant 0 : i32
    %5 = arith.cmpi ne, %4, %c0_i32_0 : i32
    scf.if %5 {
      %c0_61 = arith.constant 0 : index
      %c0_62 = arith.constant 0 : index
      %c0_63 = arith.constant 0 : index
      %134 = vector.load %arg2[%c0_61, %c0_62, %c0_63] : memref<1x8x128xf32, #tpu.memory_space<vmem>>, vector<1x8x128xf32>
      %135 = vector.shape_cast %134 : vector<1x8x128xf32> to vector<8x128xf32>
      %c0_64 = arith.constant 0 : index
      %c0_65 = arith.constant 0 : index
      %c0_66 = arith.constant 0 : index
      %136 = vector.load %arg8[%c0_64, %c0_65, %c0_66] : memref<1x8x128xf32, #tpu.memory_space<vmem>>, vector<1x8x128xf32>
      %137 = vector.shape_cast %136 : vector<1x8x128xf32> to vector<8x128xf32>
      %138 = vector.shape_cast %135 : vector<8x128xf32> to vector<1x8x128xf32>
      tpu.vector_store %arg8[%c0_64, %c0_65, %c0_66], %138 {strides = array<i32>} : memref<1x8x128xf32, #tpu.memory_space<vmem>>, vector<1x8x128xf32>,
    } else {
    }
    %c0 = arith.constant 0 : index
    %c0_1 = arith.constant 0 : index
    %c0_2 = arith.constant 0 : index
    %c0_3 = arith.constant 0 : index
    %6 = vector.load %arg3[%c0, %c0_1, %c0_2, %c0_3] : memref<1x1x32x1xf32, #tpu.memory_space<vmem>>, vector<1x1x32x1xf32>
    %7 = vector.shape_cast %6 : vector<1x1x32x1xf32> to vector<32x1xf32>
    %c0_4 = arith.constant 0 : index
    %c0_5 = arith.constant 0 : index
    %c0_6 = arith.constant 0 : index
    %8 = vector.load %arg7[%c0_4, %c0_5, %c0_6] : memref<1x32x1xf32, #tpu.memory_space<vmem>>, vector<1x32x1xf32>
    %9 = vector.shape_cast %8 : vector<1x32x1xf32> to vector<32x1xf32>
    %c0_7 = arith.constant 0 : index
    %c0_8 = arith.constant 0 : index
    %c0_9 = arith.constant 0 : index
    %10 = vector.load %arg6[%c0_7, %c0_8, %c0_9] : memref<1x16x1xf32, #tpu.memory_space<vmem>>, vector<1x16x1xf32>
    %11 = vector.shape_cast %10 : vector<1x16x1xf32> to vector<16x1xf32>
    %c0_10 = arith.constant 0 : index
    %c0_11 = arith.constant 0 : index
    %c0_12 = arith.constant 0 : index
    %12 = vector.load %arg8[%c0_10, %c0_11, %c0_12] : memref<1x8x128xf32, #tpu.memory_space<vmem>>, vector<1x8x128xf32>
    %13 = vector.shape_cast %12 : vector<1x8x128xf32> to vector<8x128xf32>
    %14 = vector.extract_strided_slice %7 {offsets = [0, 0], sizes = [8, 1], strides = [1, 1]} : vector<32x1xf32> to vector<8x1xf32>
    %15 = vector.extract_strided_slice %7 {offsets = [8, 0], sizes = [8, 1], strides = [1, 1]} : vector<32x1xf32> to vector<8x1xf32>
    %16 = vector.extract_strided_slice %9 {offsets = [0, 0], sizes = [8, 1], strides = [1, 1]} : vector<32x1xf32> to vector<8x1xf32>
    %17 = vector.extract_strided_slice %9 {offsets = [8, 0], sizes = [8, 1], strides = [1, 1]} : vector<32x1xf32> to vector<8x1xf32>
    %cst = arith.constant 0.000000e+00 : f32
    %18 = vector.broadcast %cst : f32 to vector<8x128xf32>
    %19 = arith.select %2, %13, %18 : vector<8x128xi1>, vector<8x128xf32>
    %cst_13 = arith.constant dense<0.000000e+00> : vector<8xf32>
    %20 = vector.multi_reduction <add>, %19, %cst_13 [1] : vector<8x128xf32> to vector<8xf32>
    %21 = vector.shape_cast %20 : vector<8xf32> to vector<8x1xf32>
    %cst_14 = arith.constant 1.562500e-02 : f32
    %22 = vector.broadcast %cst_14 : f32 to vector<8x1xf32>
    %23 = arith.mulf %21, %22 : vector<8x1xf32>
    %24 = vector.broadcast %23 : vector<8x1xf32> to vector<8x128xf32>
    %25 = arith.subf %13, %24 : vector<8x128xf32>
    %cst_15 = arith.constant 0.000000e+00 : f32
    %26 = vector.broadcast %cst_15 : f32 to vector<8x128xf32>
    %27 = arith.select %2, %25, %26 : vector<8x128xi1>, vector<8x128xf32>
    %28 = arith.mulf %27, %27 : vector<8x128xf32>
    %cst_16 = arith.constant dense<0.000000e+00> : vector<8xf32>
    %29 = vector.multi_reduction <add>, %28, %cst_16 [1] : vector<8x128xf32> to vector<8xf32>
    %30 = vector.shape_cast %29 : vector<8xf32> to vector<8x1xf32>
    %cst_17 = arith.constant 1.562500e-02 : f32
    %31 = vector.broadcast %cst_17 : f32 to vector<8x1xf32>
    %32 = arith.mulf %30, %31 : vector<8x1xf32>
    %cst_18 = arith.constant 1.000000e+00 : f32
    %33 = vector.broadcast %cst_18 : f32 to vector<8x1xf32>
    %34 = arith.addf %33, %14 : vector<8x1xf32>
    %cst_19 = arith.constant 9.99999974E-6 : f32
    %35 = vector.broadcast %cst_19 : f32 to vector<8x1xf32>
    %36 = arith.addf %32, %35 : vector<8x1xf32>
    %37 = math.rsqrt %36 : vector<8x1xf32>
    %38 = arith.mulf %34, %37 : vector<8x1xf32>
    %39 = vector.broadcast %38 : vector<8x1xf32> to vector<8x128xf32>
    %40 = arith.mulf %39, %25 : vector<8x128xf32>
    %41 = vector.broadcast %15 : vector<8x1xf32> to vector<8x128xf32>
    %42 = arith.addf %40, %41 : vector<8x128xf32>
    %43 = vector.broadcast %16 : vector<8x1xf32> to vector<8x128xf32>
    %44 = arith.mulf %43, %42 : vector<8x128xf32>
    %45 = math.sin %44 : vector<8x128xf32>
    %46 = arith.mulf %45, %45 : vector<8x128xf32>
    %47 = vector.broadcast %17 : vector<8x1xf32> to vector<8x128xf32>
    %48 = arith.mulf %47, %46 : vector<8x128xf32>
    %49 = arith.addf %42, %48 : vector<8x128xf32>
    %cst_20 = arith.constant 0.000000e+00 : f32
    %50 = vector.broadcast %cst_20 : f32 to vector<8x128xf32>
    %51 = arith.select %2, %49, %50 : vector<8x128xi1>, vector<8x128xf32>
    %c0_i32_21 = arith.constant 0 : i32
    %52 = arith.cmpi eq, %arg1, %c0_i32_21 : i32
    %53 = arith.extui %52 : i1 to i32
    %c0_i32_22 = arith.constant 0 : i32
    %54 = arith.cmpi ne, %53, %c0_i32_22 : i32
    scf.if %54 {
      %c1_i32_61 = arith.constant 1 : i32
      %134 = tpu.dynamic_rotate %51 by %c1_i32_61 dim 1 : vector<8x128xf32>, i32 -> vector<8x128xf32>
      %c127_i32_62 = arith.constant 127 : i32
      %135 = tpu.dynamic_rotate %51 by %c127_i32_62 dim 1 : vector<8x128xf32>, i32 -> vector<8x128xf32>
      %c1_i32_63 = arith.constant 1 : i32
      %136 = vector.broadcast %c1_i32_63 : i32 to vector<8x128xi32>
      %137 = arith.cmpi slt, %0, %136 : vector<8x128xi32>
      %cst_64 = arith.constant 0.000000e+00 : f32
      %138 = vector.broadcast %cst_64 : f32 to vector<8x128xf32>
      %139 = arith.select %137, %138, %134 : vector<8x128xi1>, vector<8x128xf32>
      %c0_65 = arith.constant 0 : index
      %c0_66 = arith.constant 0 : index
      %140 = vector.load %arg9[%c0_65, %c0_66] : memref<24x128xf32, #tpu.memory_space<vmem>>, vector<8x128xf32>
      tpu.vector_store %arg9[%c0_65, %c0_66], %139 {strides = array<i32>} : memref<24x128xf32, #tpu.memory_space<vmem>>, vector<8x128xf32>,
      %c8_67 = arith.constant 8 : index
      %c0_68 = arith.constant 0 : index
      %141 = vector.load %arg9[%c8_67, %c0_68] : memref<24x128xf32, #tpu.memory_space<vmem>>, vector<8x128xf32>
      tpu.vector_store %arg9[%c8_67, %c0_68], %51 {strides = array<i32>} : memref<24x128xf32, #tpu.memory_space<vmem>>, vector<8x128xf32>,
      %c63_i32_69 = arith.constant 63 : i32
      %142 = vector.broadcast %c63_i32_69 : i32 to vector<8x128xi32>
      %143 = arith.cmpi sge, %0, %142 : vector<8x128xi32>
      %cst_70 = arith.constant 0.000000e+00 : f32
      %144 = vector.broadcast %cst_70 : f32 to vector<8x128xf32>
      %145 = arith.select %143, %144, %135 : vector<8x128xi1>, vector<8x128xf32>
      %c16_71 = arith.constant 16 : index
      %c0_72 = arith.constant 0 : index
      %146 = vector.load %arg9[%c16_71, %c0_72] : memref<24x128xf32, #tpu.memory_space<vmem>>, vector<8x128xf32>
      tpu.vector_store %arg9[%c16_71, %c0_72], %145 {strides = array<i32>} : memref<24x128xf32, #tpu.memory_space<vmem>>, vector<8x128xf32>,
    } else {
    }
    %c1_i32 = arith.constant 1 : i32
    %55 = arith.cmpi eq, %arg1, %c1_i32 : i32
    %56 = arith.extui %55 : i1 to i32
    %c0_i32_23 = arith.constant 0 : i32
    %57 = arith.cmpi ne, %56, %c0_i32_23 : i32
    scf.if %57 {
      %c3_i32 = arith.constant 3 : i32
      %134 = tpu.dynamic_rotate %51 by %c3_i32 dim 1 : vector<8x128xf32>, i32 -> vector<8x128xf32>
      %c125_i32 = arith.constant 125 : i32
      %135 = tpu.dynamic_rotate %51 by %c125_i32 dim 1 : vector<8x128xf32>, i32 -> vector<8x128xf32>
      %c3_i32_61 = arith.constant 3 : i32
      %136 = vector.broadcast %c3_i32_61 : i32 to vector<8x128xi32>
      %137 = arith.cmpi slt, %0, %136 : vector<8x128xi32>
      %cst_62 = arith.constant 0.000000e+00 : f32
      %138 = vector.broadcast %cst_62 : f32 to vector<8x128xf32>
      %139 = arith.select %137, %138, %134 : vector<8x128xi1>, vector<8x128xf32>
      %c0_63 = arith.constant 0 : index
      %c0_64 = arith.constant 0 : index
      %140 = vector.load %arg9[%c0_63, %c0_64] : memref<24x128xf32, #tpu.memory_space<vmem>>, vector<8x128xf32>
      tpu.vector_store %arg9[%c0_63, %c0_64], %139 {strides = array<i32>} : memref<24x128xf32, #tpu.memory_space<vmem>>, vector<8x128xf32>,
      %c8_65 = arith.constant 8 : index
      %c0_66 = arith.constant 0 : index
      %141 = vector.load %arg9[%c8_65, %c0_66] : memref<24x128xf32, #tpu.memory_space<vmem>>, vector<8x128xf32>
      tpu.vector_store %arg9[%c8_65, %c0_66], %51 {strides = array<i32>} : memref<24x128xf32, #tpu.memory_space<vmem>>, vector<8x128xf32>,
      %c61_i32 = arith.constant 61 : i32
      %142 = vector.broadcast %c61_i32 : i32 to vector<8x128xi32>
      %143 = arith.cmpi sge, %0, %142 : vector<8x128xi32>
      %cst_67 = arith.constant 0.000000e+00 : f32
      %144 = vector.broadcast %cst_67 : f32 to vector<8x128xf32>
      %145 = arith.select %143, %144, %135 : vector<8x128xi1>, vector<8x128xf32>
      %c16_68 = arith.constant 16 : index
      %c0_69 = arith.constant 0 : index
      %146 = vector.load %arg9[%c16_68, %c0_69] : memref<24x128xf32, #tpu.memory_space<vmem>>, vector<8x128xf32>
      tpu.vector_store %arg9[%c16_68, %c0_69], %145 {strides = array<i32>} : memref<24x128xf32, #tpu.memory_space<vmem>>, vector<8x128xf32>,
    } else {
    }
    %c2_i32 = arith.constant 2 : i32
    %58 = arith.cmpi eq, %arg1, %c2_i32 : i32
    %59 = arith.extui %58 : i1 to i32
    %c0_i32_24 = arith.constant 0 : i32
    %60 = arith.cmpi ne, %59, %c0_i32_24 : i32
    scf.if %60 {
      %c5_i32 = arith.constant 5 : i32
      %134 = tpu.dynamic_rotate %51 by %c5_i32 dim 1 : vector<8x128xf32>, i32 -> vector<8x128xf32>
      %c123_i32 = arith.constant 123 : i32
      %135 = tpu.dynamic_rotate %51 by %c123_i32 dim 1 : vector<8x128xf32>, i32 -> vector<8x128xf32>
      %c5_i32_61 = arith.constant 5 : i32
      %136 = vector.broadcast %c5_i32_61 : i32 to vector<8x128xi32>
      %137 = arith.cmpi slt, %0, %136 : vector<8x128xi32>
      %cst_62 = arith.constant 0.000000e+00 : f32
      %138 = vector.broadcast %cst_62 : f32 to vector<8x128xf32>
      %139 = arith.select %137, %138, %134 : vector<8x128xi1>, vector<8x128xf32>
      %c0_63 = arith.constant 0 : index
      %c0_64 = arith.constant 0 : index
      %140 = vector.load %arg9[%c0_63, %c0_64] : memref<24x128xf32, #tpu.memory_space<vmem>>, vector<8x128xf32>
      tpu.vector_store %arg9[%c0_63, %c0_64], %139 {strides = array<i32>} : memref<24x128xf32, #tpu.memory_space<vmem>>, vector<8x128xf32>,
      %c8_65 = arith.constant 8 : index
      %c0_66 = arith.constant 0 : index
      %141 = vector.load %arg9[%c8_65, %c0_66] : memref<24x128xf32, #tpu.memory_space<vmem>>, vector<8x128xf32>
      tpu.vector_store %arg9[%c8_65, %c0_66], %51 {strides = array<i32>} : memref<24x128xf32, #tpu.memory_space<vmem>>, vector<8x128xf32>,
      %c59_i32 = arith.constant 59 : i32
      %142 = vector.broadcast %c59_i32 : i32 to vector<8x128xi32>
      %143 = arith.cmpi sge, %0, %142 : vector<8x128xi32>
      %cst_67 = arith.constant 0.000000e+00 : f32
      %144 = vector.broadcast %cst_67 : f32 to vector<8x128xf32>
      %145 = arith.select %143, %144, %135 : vector<8x128xi1>, vector<8x128xf32>
      %c16_68 = arith.constant 16 : index
      %c0_69 = arith.constant 0 : index
      %146 = vector.load %arg9[%c16_68, %c0_69] : memref<24x128xf32, #tpu.memory_space<vmem>>, vector<8x128xf32>
      tpu.vector_store %arg9[%c16_68, %c0_69], %145 {strides = array<i32>} : memref<24x128xf32, #tpu.memory_space<vmem>>, vector<8x128xf32>,
    } else {
    }
    %c0_25 = arith.constant 0 : index
    %c0_26 = arith.constant 0 : index
    %c0_27 = arith.constant 0 : index
    %61 = vector.load %arg4[%c0_25, %c0_26, %c0_27] : memref<1x8x24xf32, #tpu.memory_space<vmem>>, vector<1x8x24xf32>
    %62 = vector.shape_cast %61 : vector<1x8x24xf32> to vector<8x24xf32>
    %c0_28 = arith.constant 0 : index
    %c0_29 = arith.constant 0 : index
    %63 = vector.load %arg9[%c0_28, %c0_29] : memref<24x128xf32, #tpu.memory_space<vmem>>, vector<24x128xf32>
    %cst_30 = arith.constant dense<0.000000e+00> : vector<8x128xf32>
    %64 = tpu.matmul %62, %63, %cst_30 {dimension_numbers = #tpu.dot_dimension_numbers<[1], [0], [0], [1], [0, 0, 1, 1], [], []>} : vector<8x24xf32>, vector<24x128xf32>, vector<8x128xf32> -> vector<8x128xf32>
    %65 = vector.extract_strided_slice %11 {offsets = [0, 0], sizes = [8, 1], strides = [1, 1]} : vector<16x1xf32> to vector<8x1xf32>
    %66 = vector.broadcast %65 : vector<8x1xf32> to vector<8x128xf32>
    %67 = arith.addf %64, %66 : vector<8x128xf32>
    %68 = vector.extract_strided_slice %7 {offsets = [16, 0], sizes = [8, 1], strides = [1, 1]} : vector<32x1xf32> to vector<8x1xf32>
    %69 = vector.extract_strided_slice %7 {offsets = [24, 0], sizes = [8, 1], strides = [1, 1]} : vector<32x1xf32> to vector<8x1xf32>
    %70 = vector.extract_strided_slice %9 {offsets = [16, 0], sizes = [8, 1], strides = [1, 1]} : vector<32x1xf32> to vector<8x1xf32>
    %71 = vector.extract_strided_slice %9 {offsets = [24, 0], sizes = [8, 1], strides = [1, 1]} : vector<32x1xf32> to vector<8x1xf32>
    %cst_31 = arith.constant 0.000000e+00 : f32
    %72 = vector.broadcast %cst_31 : f32 to vector<8x128xf32>
    %73 = arith.select %2, %67, %72 : vector<8x128xi1>, vector<8x128xf32>
    %cst_32 = arith.constant dense<0.000000e+00> : vector<8xf32>
    %74 = vector.multi_reduction <add>, %73, %cst_32 [1] : vector<8x128xf32> to vector<8xf32>
    %75 = vector.shape_cast %74 : vector<8xf32> to vector<8x1xf32>
    %cst_33 = arith.constant 1.562500e-02 : f32
    %76 = vector.broadcast %cst_33 : f32 to vector<8x1xf32>
    %77 = arith.mulf %75, %76 : vector<8x1xf32>
    %78 = vector.broadcast %77 : vector<8x1xf32> to vector<8x128xf32>
    %79 = arith.subf %67, %78 : vector<8x128xf32>
    %cst_34 = arith.constant 0.000000e+00 : f32
    %80 = vector.broadcast %cst_34 : f32 to vector<8x128xf32>
    %81 = arith.select %2, %79, %80 : vector<8x128xi1>, vector<8x128xf32>
    %82 = arith.mulf %81, %81 : vector<8x128xf32>
    %cst_35 = arith.constant dense<0.000000e+00> : vector<8xf32>
    %83 = vector.multi_reduction <add>, %82, %cst_35 [1] : vector<8x128xf32> to vector<8xf32>
    %84 = vector.shape_cast %83 : vector<8xf32> to vector<8x1xf32>
    %cst_36 = arith.constant 1.562500e-02 : f32
    %85 = vector.broadcast %cst_36 : f32 to vector<8x1xf32>
    %86 = arith.mulf %84, %85 : vector<8x1xf32>
    %cst_37 = arith.constant 1.000000e+00 : f32
    %87 = vector.broadcast %cst_37 : f32 to vector<8x1xf32>
    %88 = arith.addf %87, %68 : vector<8x1xf32>
    %cst_38 = arith.constant 9.99999974E-6 : f32
    %89 = vector.broadcast %cst_38 : f32 to vector<8x1xf32>
    %90 = arith.addf %86, %89 : vector<8x1xf32>
    %91 = math.rsqrt %90 : vector<8x1xf32>
    %92 = arith.mulf %88, %91 : vector<8x1xf32>
    %93 = vector.broadcast %92 : vector<8x1xf32> to vector<8x128xf32>
    %94 = arith.mulf %93, %79 : vector<8x128xf32>
    %95 = vector.broadcast %69 : vector<8x1xf32> to vector<8x128xf32>
    %96 = arith.addf %94, %95 : vector<8x128xf32>
    %97 = vector.broadcast %70 : vector<8x1xf32> to vector<8x128xf32>
    %98 = arith.mulf %97, %96 : vector<8x128xf32>
    %99 = math.sin %98 : vector<8x128xf32>
    %100 = arith.mulf %99, %99 : vector<8x128xf32>
    %101 = vector.broadcast %71 : vector<8x1xf32> to vector<8x128xf32>
    %102 = arith.mulf %101, %100 : vector<8x128xf32>
    %103 = arith.addf %96, %102 : vector<8x128xf32>
    %cst_39 = arith.constant 0.000000e+00 : f32
    %104 = vector.broadcast %cst_39 : f32 to vector<8x128xf32>
    %105 = arith.select %2, %103, %104 : vector<8x128xi1>, vector<8x128xf32>
    %c1_i32_40 = arith.constant 1 : i32
    %106 = tpu.dynamic_rotate %105 by %c1_i32_40 dim 1 : vector<8x128xf32>, i32 -> vector<8x128xf32>
    %c127_i32 = arith.constant 127 : i32
    %107 = tpu.dynamic_rotate %105 by %c127_i32 dim 1 : vector<8x128xf32>, i32 -> vector<8x128xf32>
    %c1_i32_41 = arith.constant 1 : i32
    %108 = vector.broadcast %c1_i32_41 : i32 to vector<8x128xi32>
    %109 = arith.cmpi slt, %0, %108 : vector<8x128xi32>
    %cst_42 = arith.constant 0.000000e+00 : f32
    %110 = vector.broadcast %cst_42 : f32 to vector<8x128xf32>
    %111 = arith.select %109, %110, %106 : vector<8x128xi1>, vector<8x128xf32>
    %c0_43 = arith.constant 0 : index
    %c0_44 = arith.constant 0 : index
    %112 = vector.load %arg9[%c0_43, %c0_44] : memref<24x128xf32, #tpu.memory_space<vmem>>, vector<8x128xf32>
    tpu.vector_store %arg9[%c0_43, %c0_44], %111 {strides = array<i32>} : memref<24x128xf32, #tpu.memory_space<vmem>>, vector<8x128xf32>,
    %c8 = arith.constant 8 : index
    %c0_45 = arith.constant 0 : index
    %113 = vector.load %arg9[%c8, %c0_45] : memref<24x128xf32, #tpu.memory_space<vmem>>, vector<8x128xf32>
    tpu.vector_store %arg9[%c8, %c0_45], %105 {strides = array<i32>} : memref<24x128xf32, #tpu.memory_space<vmem>>, vector<8x128xf32>,
    %c63_i32 = arith.constant 63 : i32
    %114 = vector.broadcast %c63_i32 : i32 to vector<8x128xi32>
    %115 = arith.cmpi sge, %0, %114 : vector<8x128xi32>
    %cst_46 = arith.constant 0.000000e+00 : f32
    %116 = vector.broadcast %cst_46 : f32 to vector<8x128xf32>
    %117 = arith.select %115, %116, %107 : vector<8x128xi1>, vector<8x128xf32>
    %c16 = arith.constant 16 : index
    %c0_47 = arith.constant 0 : index
    %118 = vector.load %arg9[%c16, %c0_47] : memref<24x128xf32, #tpu.memory_space<vmem>>, vector<8x128xf32>
    tpu.vector_store %arg9[%c16, %c0_47], %117 {strides = array<i32>} : memref<24x128xf32, #tpu.memory_space<vmem>>, vector<8x128xf32>,
    %c0_48 = arith.constant 0 : index
    %c0_49 = arith.constant 0 : index
    %c0_50 = arith.constant 0 : index
    %119 = vector.load %arg5[%c0_48, %c0_49, %c0_50] : memref<1x8x24xf32, #tpu.memory_space<vmem>>, vector<1x8x24xf32>
    %120 = vector.shape_cast %119 : vector<1x8x24xf32> to vector<8x24xf32>
    %c0_51 = arith.constant 0 : index
    %c0_52 = arith.constant 0 : index
    %121 = vector.load %arg9[%c0_51, %c0_52] : memref<24x128xf32, #tpu.memory_space<vmem>>, vector<24x128xf32>
    %cst_53 = arith.constant dense<0.000000e+00> : vector<8x128xf32>
    %122 = tpu.matmul %120, %121, %cst_53 {dimension_numbers = #tpu.dot_dimension_numbers<[1], [0], [0], [1], [0, 0, 1, 1], [], []>} : vector<8x24xf32>, vector<24x128xf32>, vector<8x128xf32> -> vector<8x128xf32>
    %123 = vector.extract_strided_slice %11 {offsets = [8, 0], sizes = [8, 1], strides = [1, 1]} : vector<16x1xf32> to vector<8x1xf32>
    %124 = vector.broadcast %123 : vector<8x1xf32> to vector<8x128xf32>
    %125 = arith.addf %122, %124 : vector<8x128xf32>
    %cst_54 = arith.constant 0.000000e+00 : f32
    %126 = vector.broadcast %cst_54 : f32 to vector<8x128xf32>
    %127 = arith.select %2, %125, %126 : vector<8x128xi1>, vector<8x128xf32>
    %c0_55 = arith.constant 0 : index
    %c0_56 = arith.constant 0 : index
    %c0_57 = arith.constant 0 : index
    %128 = vector.load %arg8[%c0_55, %c0_56, %c0_57] : memref<1x8x128xf32, #tpu.memory_space<vmem>>, vector<1x8x128xf32>
    %129 = vector.shape_cast %128 : vector<1x8x128xf32> to vector<8x128xf32>
    %130 = arith.addf %129, %127 : vector<8x128xf32>
    %c0_58 = arith.constant 0 : index
    %c0_59 = arith.constant 0 : index
    %c0_60 = arith.constant 0 : index
    %131 = vector.load %arg8[%c0_58, %c0_59, %c0_60] : memref<1x8x128xf32, #tpu.memory_space<vmem>>, vector<1x8x128xf32>
    %132 = vector.shape_cast %131 : vector<1x8x128xf32> to vector<8x128xf32>
    %133 = vector.shape_cast %130 : vector<8x128xf32> to vector<1x8x128xf32>
    tpu.vector_store %arg8[%c0_58, %c0_59, %c0_60], %133 {strides = array<i32>} : memref<1x8x128xf32, #tpu.memory_space<vmem>>, vector<1x8x128xf32>,
    return
  }
  func.func @transform_0(%arg0: i32, %arg1: i32) -> (i32, i32, i32) {
    %c0_i32 = arith.constant 0 : i32
    %c0_i32_0 = arith.constant 0 : i32
    %c0_i32_1 = arith.constant 0 : i32
    return %arg0, %c0_i32, %c0_i32_0 : i32, i32, i32
  }
  func.func @transform_1(%arg0: i32, %arg1: i32) -> (i32, i32, i32, i32) {
    %c0_i32 = arith.constant 0 : i32
    %c0_i32_0 = arith.constant 0 : i32
    %c0_i32_1 = arith.constant 0 : i32
    return %arg0, %arg1, %c0_i32, %c0_i32_0 : i32, i32, i32, i32
  }
  func.func @transform_2(%arg0: i32, %arg1: i32) -> (i32, i32, i32) {
    %c0_i32 = arith.constant 0 : i32
    %c0_i32_0 = arith.constant 0 : i32
    %c0_i32_1 = arith.constant 0 : i32
    return %arg1, %c0_i32, %c0_i32_0 : i32, i32, i32
  }
  func.func @transform_3(%arg0: i32, %arg1: i32) -> (i32, i32, i32) {
    %c0_i32 = arith.constant 0 : i32
    %c0_i32_0 = arith.constant 0 : i32
    %c0_i32_1 = arith.constant 0 : i32
    return %arg1, %c0_i32, %c0_i32_0 : i32, i32, i32
  }
  func.func @transform_4(%arg0: i32, %arg1: i32) -> (i32, i32, i32) {
    %c0_i32 = arith.constant 0 : i32
    %c0_i32_0 = arith.constant 0 : i32
    %c0_i32_1 = arith.constant 0 : i32
    return %arg1, %c0_i32, %c0_i32_0 : i32, i32, i32
  }
  func.func @transform_5(%arg0: i32, %arg1: i32) -> (i32, i32, i32) {
    %c0_i32 = arith.constant 0 : i32
    %c0_i32_0 = arith.constant 0 : i32
    %c0_i32_1 = arith.constant 0 : i32
    return %arg1, %c0_i32, %c0_i32_0 : i32, i32, i32
  }
  func.func @transform_6(%arg0: i32, %arg1: i32) -> (i32, i32, i32) {
    %c0_i32 = arith.constant 0 : i32
    %c0_i32_0 = arith.constant 0 : i32
    %c0_i32_1 = arith.constant 0 : i32
    return %arg0, %c0_i32, %c0_i32_0 : i32, i32, i32
  }
}

</mosaic_0001>

<llo_original>
// kernel: tpu_custom_call.1
$region0: #{tpu_custom_call.1}
  #allocation0 [shape = 'u32[]', space=smem, size = 0x4, offset = 0x4, fixed_abs, tag = 'smem constant byte address 0x4 - core index']
  #allocation1 [shape = 'u32[144,128]{1,0:T(1,128)}', space=vmem, size = 0x12000, scoped, tag = 'internal scratch']
  #allocation2 [shape = 'f32[24,128]{1,0:T(8,128)}', space=vmem, size = 0x3000, scoped, tag = 'scratch operand']
  %s0 = inlined_call_operand.hbm [shape: f32[2,8,128], index: 0, kind: input, shape index: {}, may-alias: {0,6}]
  %s1 = inlined_call_operand.vmem [shape: f32[2,3,32,1], index: 1, kind: input, shape index: {}]
  %s2 = inlined_call_operand.vmem [shape: f32[3,8,24], index: 2, kind: input, shape index: {}]
  %s3 = inlined_call_operand.vmem [shape: f32[3,8,24], index: 3, kind: input, shape index: {}]
  %s4 = inlined_call_operand.vmem [shape: f32[3,16,1], index: 4, kind: input, shape index: {}]
  %s5 = inlined_call_operand.vmem [shape: f32[3,32,1], index: 5, kind: input, shape index: {}]
  %s6 = inlined_call_operand.hbm [shape: f32[2,8,128], index: 6, kind: output, shape index: {}, may-alias: {0,6}]
  %s7 = sld [smem:[#allocation0]]
  $region77: #{tpu_custom_call.1} parent=0
    _
  %s9 = ssub.s32 1, %s7
  %s10 = scalar_select 0, %s9, %s7
  $region1: #{tpu_custom_call.1} parent=0
    #allocation3 [shape = 'u8[8192]{0}', space=vmem, size = 0x2000, scoped, tag = 'input window, operand 0']
    #allocation4 [shape = 's32[2]{0}', space=sflag, size = 0x8, scoped, tag = 'scoped memory for tpu_custom_call.1']
    #allocation5 [shape = 's32[2]{0}', space=sflag, size = 0x8, scoped, tag = 'scoped memory for tpu_custom_call.1']
    #allocation6 [shape = 'u8[8192]{0}', space=vmem, size = 0x2000, scoped, tag = 'output window, operand 0']
    %11 = vsyncpa [#allocation4], 0
    %s12 = scalar_lea.sflag [#allocation4], 1
    %13 = vsyncpa %s12, 0
    %14 = vsyncpa [#allocation5], 0
    %s15 = scalar_lea.sflag [#allocation5], 1
    %16 = vsyncpa %s15, 0
    loop: start=0, step=1, limit=8
    $region2: #{tpu_custom_call.1} parent=1 // loop_pre_header
      _
    $region3: #{tpu_custom_call.1} parent=1 // loop_header
      %s18 = sphi 0, %s22
      %p19 = scmp.ge.s32.totalorder %s18, 8
      %s25 = sphi 0, %s37
      %s26 = sphi 0, %s33
      %s27 = sphi 0, %s25
      %s28 = sphi 0, %s26
      %s29 = sphi 0, %s27
      %s30 = sphi 0, %s28
      %s40 = sphi 0, %s42
      %s43 = sphi 0, %s40
      %s44 = sphi 0, %s43
      %s60 = sphi 0, %s44
      %s68 = sphi 0, %s70
      %s71 = sphi 0, %s68
      %s72 = sphi 0, %s71
      %s88 = sphi 0, %s72
      %s94 = sphi 0, %s96
      %s97 = sphi 0, %s94
      %s98 = sphi 0, %s97
      %s114 = sphi 0, %s98
      %s120 = sphi 0, %s122
      %s123 = sphi 0, %s120
      %s124 = sphi 0, %s123
      %s140 = sphi 0, %s124
      %s146 = sphi 0, %s148
      %s149 = sphi 0, %s146
      %s150 = sphi 0, %s149
      %s166 = sphi 0, %s150
      %s172 = sphi 0, %s174
      %s175 = sphi 0, %s172
      %s176 = sphi 0, %s175
      %s192 = sphi 0, %s176
      %s198 = sphi 0, %s200
      %s201 = sphi 0, %s198
      %s202 = sphi 0, %s201
      %s218 = sphi 0, %s202
    $region4: #{tpu_custom_call.1} parent=1 // loop_header_branch
      %21 = sbr.rel (%p19) target = $region8
    $region5: #{tpu_custom_call.1} parent=1 // loop_body
      %s23 = ssub.s32 %s18, 1
      %s24 = ssub.s32 %s18, 2
      %s31 = sadd.s32 1, %s26
      %p32 = scmp.ge.s32.totalorder %s31, 3
      %s33 = scalar_select %p32, 0, %s31
      %s34 = sadd.s32 1, %s25
      %s35 = scalar_select %p32, %s34, %s25
      %p36 = scmp.ge.s32.totalorder %s35, 2
      %s37 = scalar_select %p36, 0, %s35
      %s38 = ssub.s32 %s25, %s37
      %p39 = scmp.eq.s32.totalorder %s38, 0
      %s41 = sadd.s32 %s40, 1
      %s42 = scalar_select %p39, %s40, %s41
      %p45 = pneg %p39
      %p46 = scmp.eq.s32.totalorder %s18, 5
      %p47 = por %p45, %p46
      %p48 = scmp.ne.s32.totalorder %s40, %s43
      %p49 = scmp.eq.s32.totalorder %s18, 0
      %p50 = por %p48, %p49
      %p51 = scmp.ne.s32.totalorder %s40, %s43
      %p52 = scmp.eq.s32.totalorder %s23, 5
      %p53 = por %p51, %p52
      %p54 = scmp.ne.s32.totalorder %s43, %s44
      %p55 = scmp.eq.s32.totalorder %s23, 0
      %p56 = por %p54, %p55
      %p57 = scmp.ne.s32.totalorder %s43, %s44
      %p58 = scmp.eq.s32.totalorder %s24, 5
      %p59 = por %p57, %p58
      %p61 = scmp.ne.s32.totalorder %s44, %s60
      %p62 = scmp.eq.s32.totalorder %s24, 0
      %p63 = por %p61, %p62
      %s64 = ssub.s32 %s25, %s37
      %s65 = ssub.s32 %s26, %s33
      %s66 = sor.u32 %s64, %s65
      %p67 = scmp.eq.s32.totalorder %s66, 0
      %s69 = sadd.s32 %s68, 1
      %s70 = scalar_select %p67, %s68, %s69
      %p73 = pneg %p67
      %p74 = scmp.eq.s32.totalorder %s18, 5
      %p75 = por %p73, %p74
      %p76 = scmp.ne.s32.totalorder %s68, %s71
      %p77 = scmp.eq.s32.totalorder %s18, 0
      %p78 = por %p76, %p77
      %p79 = scmp.ne.s32.totalorder %s68, %s71
      %p80 = scmp.eq.s32.totalorder %s23, 5
      %p81 = por %p79, %p80
      %p82 = scmp.ne.s32.totalorder %s71, %s72
      %p83 = scmp.eq.s32.totalorder %s23, 0
      %p84 = por %p82, %p83
      %p85 = scmp.ne.s32.totalorder %s71, %s72
      %p86 = scmp.eq.s32.totalorder %s24, 5
      %p87 = por %p85, %p86
      %p89 = scmp.ne.s32.totalorder %s72, %s88
      %p90 = scmp.eq.s32.totalorder %s24, 0
      %p91 = por %p89, %p90
      %s92 = ssub.s32 %s26, %s33
      %p93 = scmp.eq.s32.totalorder %s92, 0
      %s95 = sadd.s32 %s94, 1
      %s96 = scalar_select %p93, %s94, %s95
      %p99 = pneg %p93
      %p100 = scmp.eq.s32.totalorder %s18, 5
      %p101 = por %p99, %p100
      %p102 = scmp.ne.s32.totalorder %s94, %s97
      %p103 = scmp.eq.s32.totalorder %s18, 0
      %p104 = por %p102, %p103
      %p105 = scmp.ne.s32.totalorder %s94, %s97
      %p106 = scmp.eq.s32.totalorder %s23, 5
      %p107 = por %p105, %p106
      %p108 = scmp.ne.s32.totalorder %s97, %s98
      %p109 = scmp.eq.s32.totalorder %s23, 0
      %p110 = por %p108, %p109
      %p111 = scmp.ne.s32.totalorder %s97, %s98
      %p112 = scmp.eq.s32.totalorder %s24, 5
      %p113 = por %p111, %p112
      %p115 = scmp.ne.s32.totalorder %s98, %s114
      %p116 = scmp.eq.s32.totalorder %s24, 0
      %p117 = por %p115, %p116
      %s118 = ssub.s32 %s26, %s33
      %p119 = scmp.eq.s32.totalorder %s118, 0
      %s121 = sadd.s32 %s120, 1
      %s122 = scalar_select %p119, %s120, %s121
      %p125 = pneg %p119
      %p126 = scmp.eq.s32.totalorder %s18, 5
      %p127 = por %p125, %p126
      %p128 = scmp.ne.s32.totalorder %s120, %s123
      %p129 = scmp.eq.s32.totalorder %s18, 0
      %p130 = por %p128, %p129
      %p131 = scmp.ne.s32.totalorder %s120, %s123
      %p132 = scmp.eq.s32.totalorder %s23, 5
      %p133 = por %p131, %p132
      %p134 = scmp.ne.s32.totalorder %s123, %s124
      %p135 = scmp.eq.s32.totalorder %s23, 0
      %p136 = por %p134, %p135
      %p137 = scmp.ne.s32.totalorder %s123, %s124
      %p138 = scmp.eq.s32.totalorder %s24, 5
      %p139 = por %p137, %p138
      %p141 = scmp.ne.s32.totalorder %s124, %s140
      %p142 = scmp.eq.s32.totalorder %s24, 0
      %p143 = por %p141, %p142
      %s144 = ssub.s32 %s26, %s33
      %p145 = scmp.eq.s32.totalorder %s144, 0
      %s147 = sadd.s32 %s146, 1
      %s148 = scalar_select %p145, %s146, %s147
      %p151 = pneg %p145
      %p152 = scmp.eq.s32.totalorder %s18, 5
      %p153 = por %p151, %p152
      %p154 = scmp.ne.s32.totalorder %s146, %s149
      %p155 = scmp.eq.s32.totalorder %s18, 0
      %p156 = por %p154, %p155
      %p157 = scmp.ne.s32.totalorder %s146, %s149
      %p158 = scmp.eq.s32.totalorder %s23, 5
      %p159 = por %p157, %p158
      %p160 = scmp.ne.s32.totalorder %s149, %s150
      %p161 = scmp.eq.s32.totalorder %s23, 0
      %p162 = por %p160, %p161
      %p163 = scmp.ne.s32.totalorder %s149, %s150
      %p164 = scmp.eq.s32.totalorder %s24, 5
      %p165 = por %p163, %p164
      %p167 = scmp.ne.s32.totalorder %s150, %s166
      %p168 = scmp.eq.s32.totalorder %s24, 0
      %p169 = por %p167, %p168
      %s170 = ssub.s32 %s26, %s33
      %p171 = scmp.eq.s32.totalorder %s170, 0
      %s173 = sadd.s32 %s172, 1
      %s174 = scalar_select %p171, %s172, %s173
      %p177 = pneg %p171
      %p178 = scmp.eq.s32.totalorder %s18, 5
      %p179 = por %p177, %p178
      %p180 = scmp.ne.s32.totalorder %s172, %s175
      %p181 = scmp.eq.s32.totalorder %s18, 0
      %p182 = por %p180, %p181
      %p183 = scmp.ne.s32.totalorder %s172, %s175
      %p184 = scmp.eq.s32.totalorder %s23, 5
      %p185 = por %p183, %p184
      %p186 = scmp.ne.s32.totalorder %s175, %s176
      %p187 = scmp.eq.s32.totalorder %s23, 0
      %p188 = por %p186, %p187
      %p189 = scmp.ne.s32.totalorder %s175, %s176
      %p190 = scmp.eq.s32.totalorder %s24, 5
      %p191 = por %p189, %p190
      %p193 = scmp.ne.s32.totalorder %s176, %s192
      %p194 = scmp.eq.s32.totalorder %s24, 0
      %p195 = por %p193, %p194
      %s196 = ssub.s32 %s25, %s37
      %p197 = scmp.eq.s32.totalorder %s196, 0
      %s199 = sadd.s32 %s198, 1
      %s200 = scalar_select %p197, %s198, %s199
      %p203 = pneg %p197
      %p204 = scmp.eq.s32.totalorder %s18, 5
      %p205 = por %p203, %p204
      %p206 = scmp.ne.s32.totalorder %s198, %s201
      %p207 = scmp.eq.s32.totalorder %s18, 0
      %p208 = por %p206, %p207
      %p209 = scmp.ne.s32.totalorder %s198, %s201
      %p210 = scmp.eq.s32.totalorder %s23, 5
      %p211 = por %p209, %p210
      %p212 = scmp.ne.s32.totalorder %s201, %s202
      %p213 = scmp.eq.s32.totalorder %s23, 0
      %p214 = por %p212, %p213
      %p215 = scmp.ne.s32.totalorder %s201, %s202
      %p216 = scmp.eq.s32.totalorder %s24, 5
      %p217 = por %p215, %p216
      %p219 = scmp.ne.s32.totalorder %s202, %s218
      %p220 = scmp.eq.s32.totalorder %s24, 0
      %p221 = por %p219, %p220
      %p222 = scmp.le.s32.totalorder 1, %s18
      %p223 = scmp.lt.s32.totalorder %s18, 7
      %p224 = pnand %p222, %p223
      %p225 = pneg %p224
      // Predicated region
      $region9: #{tpu_custom_call.1} parent=5 // pred_check
        _
      $region10: #{tpu_custom_call.1} parent=5 // pred_check_branch
        %227 = sbr.rel (%p224) target = $region12
      $region11: #{tpu_custom_call.1} parent=5 // pred_region
        %s228 = ssub.s32 %s18, 1
      $region12: #{tpu_custom_call.1} parent=5 // pred_fallthru
        _
      %p229 = scmp.lt.s32.totalorder %s18, 6
      // Predicated region
      $region13: #{tpu_custom_call.1} parent=5 // pred_check
        %p230 = pneg %p229
      $region14: #{tpu_custom_call.1} parent=5 // pred_check_branch
        %232 = sbr.rel (%p230) target = $region16
      $region15: #{tpu_custom_call.1} parent=5 // pred_region
        // Predicated region
        $region17: #{tpu_custom_call.1} parent=15 // pred_check
          %p233 = pneg %p50
        $region18: #{tpu_custom_call.1} parent=15 // pred_check_branch
          %235 = sbr.rel (%p233) target = $region20
        $region19: #{tpu_custom_call.1} parent=15 // pred_region
          %s236 = sand.u32 %s40, 1
          %s237 = scalar_lea.sflag [#allocation4], %s236
          %s238 = sand.u32 %s40, 1
          %s239 = smul.addr %s238, 8
          %s240 = scalar_lea.vmem [#allocation3], %s239
          %s242 = ssub.s32 128, 128
          %243 = vsyncadd %s237, %s242
          %s244 = smul.addr %s25, 128
          %s245 = scalar_lea.hbm %s0, %s244
          %s247 = sshll.u32 %s240, 4
          %s248 = int_to_ptr.vmem [resolvable:$true] %s247
          %250 = dma.hbm_to_vmem [thread:$0]  %s245, 128, %s248, %s237
        $region20: #{tpu_custom_call.1} parent=15 // pred_fallthru
          _
        // Predicated region
        $region21: #{tpu_custom_call.1} parent=15 // pred_check
          %p251 = pneg %p78
        $region22: #{tpu_custom_call.1} parent=15 // pred_check_branch
          %253 = sbr.rel (%p251) target = $region24
        $region23: #{tpu_custom_call.1} parent=15 // pred_region
          %p254 = scmp.lt.s32.totalorder %s25, 1
          %s255 = scalar_select %p254, %s25, 1
          %p256 = scmp.lt.s32.totalorder %s26, 2
          %s257 = scalar_select %p256, %s26, 2
          %s258 = smul.addr %s257, 4
          %s259 = smul.addr %s255, 12
          %s260 = sadd.s32 %s258, %s259
          %s261 = smul.addr %s260, 8
          %s262 = scalar_lea.vmem %s1, %s261
        $region24: #{tpu_custom_call.1} parent=15 // pred_fallthru
          _
        // Predicated region
        $region25: #{tpu_custom_call.1} parent=15 // pred_check
          %p263 = pneg %p104
        $region26: #{tpu_custom_call.1} parent=15 // pred_check_branch
          %265 = sbr.rel (%p263) target = $region28
        $region27: #{tpu_custom_call.1} parent=15 // pred_region
          %p266 = scmp.lt.s32.totalorder %s26, 2
          %s267 = scalar_select %p266, %s26, 2
          %s268 = smul.addr %s267, 8
          %s269 = scalar_lea.vmem %s2, %s268
        $region28: #{tpu_custom_call.1} parent=15 // pred_fallthru
          _
        // Predicated region
        $region29: #{tpu_custom_call.1} parent=15 // pred_check
          %p270 = pneg %p130
        $region30: #{tpu_custom_call.1} parent=15 // pred_check_branch
          %272 = sbr.rel (%p270) target = $region32
        $region31: #{tpu_custom_call.1} parent=15 // pred_region
          %p273 = scmp.lt.s32.totalorder %s26, 2
          %s274 = scalar_select %p273, %s26, 2
          %s275 = smul.addr %s274, 8
          %s276 = scalar_lea.vmem %s3, %s275
        $region32: #{tpu_custom_call.1} parent=15 // pred_fallthru
          _
        // Predicated region
        $region33: #{tpu_custom_call.1} parent=15 // pred_check
          %p277 = pneg %p156
        $region34: #{tpu_custom_call.1} parent=15 // pred_check_branch
          %279 = sbr.rel (%p277) target = $region36
        $region35: #{tpu_custom_call.1} parent=15 // pred_region
          %p280 = scmp.lt.s32.totalorder %s26, 2
          %s281 = scalar_select %p280, %s26, 2
          %s282 = smul.addr %s281, 2
          %s283 = smul.addr %s282, 8
          %s284 = scalar_lea.vmem %s4, %s283
        $region36: #{tpu_custom_call.1} parent=15 // pred_fallthru
          _
        // Predicated region
        $region37: #{tpu_custom_call.1} parent=15 // pred_check
          %p285 = pneg %p182
        $region38: #{tpu_custom_call.1} parent=15 // pred_check_branch
          %287 = sbr.rel (%p285) target = $region40
        $region39: #{tpu_custom_call.1} parent=15 // pred_region
          %p288 = scmp.lt.s32.totalorder %s26, 2
          %s289 = scalar_select %p288, %s26, 2
          %s290 = smul.addr %s289, 4
          %s291 = smul.addr %s290, 8
          %s292 = scalar_lea.vmem %s5, %s291
        $region40: #{tpu_custom_call.1} parent=15 // pred_fallthru
          _
      $region16: #{tpu_custom_call.1} parent=5 // pred_fallthru
        _
      %p293 = scmp.le.s32.totalorder 1, %s18
      %p294 = scmp.lt.s32.totalorder %s18, 7
      %p295 = pnand %p293, %p294
      %p296 = pneg %p295
      // Predicated region
      $region41: #{tpu_custom_call.1} parent=5 // pred_check
        _
      $region42: #{tpu_custom_call.1} parent=5 // pred_check_branch
        %298 = sbr.rel (%p295) target = $region44
      $region43: #{tpu_custom_call.1} parent=5 // pred_region
        %s299 = ssub.s32 %s18, 1
        %s300 = sand.u32 %s43, 1
        %s301 = scalar_lea.sflag [#allocation4], %s300
        %s302 = sand.u32 %s43, 1
        %s303 = smul.addr %s302, 8
        %s304 = scalar_lea.vmem [#allocation3], %s303
        // Predicated region
        $region45: #{tpu_custom_call.1} parent=43 // pred_check
          %p305 = pneg %p56
        $region46: #{tpu_custom_call.1} parent=43 // pred_check_branch
          %307 = sbr.rel (%p305) target = $region48
        $region47: #{tpu_custom_call.1} parent=43 // pred_region
          %308 = dma.done %s301, 128
        $region48: #{tpu_custom_call.1} parent=43 // pred_fallthru
          _
        %s309 = sand.u32 %s43, 1
        %s310 = scalar_lea.sflag [#allocation4], %s309
        %s311 = sand.u32 %s43, 1
        %s312 = smul.addr %s311, 8
        %s313 = scalar_lea.vmem [#allocation3], %s312
        %p314 = pneg %p56
        %p315 = pneg %p53
        %p316 = scmp.lt.s32.totalorder %s27, 1
        %s317 = scalar_select %p316, %s27, 1
        %p318 = scmp.lt.s32.totalorder %s28, 2
        %s319 = scalar_select %p318, %s28, 2
        %s320 = smul.addr %s319, 4
        %s321 = smul.addr %s317, 12
        %s322 = sadd.s32 %s320, %s321
        %s323 = smul.addr %s322, 8
        %s324 = scalar_lea.vmem %s1, %s323
        %p325 = pneg %p84
        %p326 = pneg %p81
        %p327 = scmp.lt.s32.totalorder %s28, 2
        %s328 = scalar_select %p327, %s28, 2
        %s329 = smul.addr %s328, 8
        %s330 = scalar_lea.vmem %s2, %s329
        %p331 = pneg %p110
        %p332 = pneg %p107
        %p333 = scmp.lt.s32.totalorder %s28, 2
        %s334 = scalar_select %p333, %s28, 2
        %s335 = smul.addr %s334, 8
        %s336 = scalar_lea.vmem %s3, %s335
        %p337 = pneg %p136
        %p338 = pneg %p133
        %p339 = scmp.lt.s32.totalorder %s28, 2
        %s340 = scalar_select %p339, %s28, 2
        %s341 = smul.addr %s340, 2
        %s342 = smul.addr %s341, 8
        %s343 = scalar_lea.vmem %s4, %s342
        %p344 = pneg %p162
        %p345 = pneg %p159
        %p346 = scmp.lt.s32.totalorder %s28, 2
        %s347 = scalar_select %p346, %s28, 2
        %s348 = smul.addr %s347, 4
        %s349 = smul.addr %s348, 8
        %s350 = scalar_lea.vmem %s5, %s349
        %p351 = pneg %p188
        %p352 = pneg %p185
        %p353 = pneg %p214
        %p354 = pneg %p211
        %s355 = sand.u32 %s201, 1
        %s356 = scalar_lea.sflag [#allocation5], %s355
        %s357 = sand.u32 %s201, 1
        %s358 = smul.addr %s357, 8
        %s359 = scalar_lea.vmem [#allocation6], %s358
        %p360 = scmp.lt.s32.totalorder %s27, 1
        %s361 = scalar_select %p360, %s27, 1
        %p362 = scmp.lt.s32.totalorder %s28, 2
        %s363 = scalar_select %p362, %s28, 2
        %s364 = smul.addr %s363, 4
        %s365 = smul.addr %s361, 12
        %s366 = sadd.s32 %s364, %s365
        %s367 = smul.addr %s366, 8
        %s368 = scalar_lea.vmem %s1, %s367
        %p369 = scmp.lt.s32.totalorder %s28, 2
        %s370 = scalar_select %p369, %s28, 2
        %s371 = smul.addr %s370, 8
        %s372 = scalar_lea.vmem %s2, %s371
        %p373 = scmp.lt.s32.totalorder %s28, 2
        %s374 = scalar_select %p373, %s28, 2
        %s375 = smul.addr %s374, 8
        %s376 = scalar_lea.vmem %s3, %s375
        %p377 = scmp.lt.s32.totalorder %s28, 2
        %s378 = scalar_select %p377, %s28, 2
        %s379 = smul.addr %s378, 2
        %s380 = smul.addr %s379, 8
        %s381 = scalar_lea.vmem %s4, %s380
        %p382 = scmp.lt.s32.totalorder %s28, 2
        %s383 = scalar_select %p382, %s28, 2
        %s384 = smul.addr %s383, 4
        %s385 = smul.addr %s384, 8
        %s386 = scalar_lea.vmem %s5, %s385
        %v387 = vlaneseq
        %v388 = vand.u32 %v387, 127
        %vm389 = vcmp.lt.s32.totalorder %v388, 64
        %p390 = scmp.eq.s32.totalorder %s28, 0
        // Predicated region
        $region49: #{tpu_custom_call.1} parent=43 // pred_check
          %p391 = pneg %p390
        $region50: #{tpu_custom_call.1} parent=43 // pred_check_branch
          %393 = sbr.rel (%p391) target = $region52
        $region51: #{tpu_custom_call.1} parent=43 // pred_region
          %v394 = vld [vmem:[%s304] sm:$0xff]
          %395 = vst [vmem:[%s359] sm:$0xff] %v394
        $region52: #{tpu_custom_call.1} parent=43 // pred_fallthru
          _
        %v396 = vld [vmem:[%s368] sm:$0xff]
        %v397 = vld [vmem:[%s368 + $0x8] sm:$0xff]
        %v398 = vld [vmem:[%s368 + $0x10] sm:$0xff]
        %v399 = vld [vmem:[%s368 + $0x18] sm:$0xff]
        %v400 = vld [vmem:[%s386] sm:$0xff]
        %v401 = vld [vmem:[%s386 + $0x8] sm:$0xff]
        %v402 = vld [vmem:[%s386 + $0x10] sm:$0xff]
        %v403 = vld [vmem:[%s386 + $0x18] sm:$0xff]
        %v404 = vld [vmem:[%s381] sm:$0xff]
        %v405 = vld [vmem:[%s381 + $0x8] sm:$0xff]
        %v406 = vld [vmem:[%s359] sm:$0xff]
        %v407 = vsel %vm389, %v406, 0.0
        %408 = vadd.xlane.f32.xlu0 %v407
        %v409 = vpop.xlane.xlu0 %408
        %v410 = vmul.f32 %v409, 0.015625
        %v411 = vsub.f32 %v406, %v410
        %v412 = vsel %vm389, %v411, 0.0
        %v413 = vmul.f32 %v412, %v412
        %414 = vadd.xlane.f32.xlu0 %v413
        %v415 = vpop.xlane.xlu0 %414
        %v416 = vmul.f32 %v415, 0.015625
        %v417 = vadd.f32 %v396, 1.0
        %v418 = vadd.f32 %v416, 1e-05
        %v419 = vrsqrt.pop %v418
        %v420 = vmul.f32 %v417, %v419
        %422 = vset.pattern.permute.xlu0 0
        %423 = vperm.xlu0 %422, %v420
        %v424 = vpop.permute.xlu0 %423
        %v426 = vmul.f32 %v424, %v411
        %428 = vset.pattern.permute.xlu0 0
        %429 = vperm.xlu0 %428, %v397
        %v430 = vpop.permute.xlu0 %429
        %v432 = vadd.f32 %v426, %v430
        %434 = vset.pattern.permute.xlu0 0
        %435 = vperm.xlu0 %434, %v400
        %v436 = vpop.permute.xlu0 %435
        %v438 = vmul.f32 %v436, %v432
        %v439 = vand.u32 2147483647, %v438
        %vm440 = vcmp.le.f32.partialorder %v439, 0.7853982
        %vm441 = vcmp.lt.s32.totalorder %v438, 0
        %v442 = vand.u32 %v438, 2139095040
        %v443 = vshrl.u32 %v442, 23
        %v444 = vsub.s32 %v443, 127
        %v445 = vand.u32 2147483647, %v438
        %v446 = vand.u32 %v445, 8388607
        %v447 = vor.u32 %v446, 8388608
        %v448 = vsub.s32 0, %v447
        %v449 = vadd.s32 %v444, 1
        %vm450 = vcmp.gt.s32.totalorder %v449, 0
        %v451 = vsel %vm450, %v449, 0
        %v452 = vshrl.u32 %v451, 5
        %v453 = vand.u32 %v451, 31
        %v454 = vsub.s32 32, %v453
        %v455 = vshrl.u32 683565275, %v454
        %v456 = vshll.u32 683565275, %v453
        %v457 = vshrl.u32 2475754826, %v454
        %v458 = vor.u32 %v456, %v457
        %v459 = vshll.u32 2475754826, %v453
        %v460 = vshrl.u32 2131351028, %v454
        %v461 = vor.u32 %v459, %v460
        %v462 = vshll.u32 2131351028, %v453
        %v463 = vshrl.u32 2102212464, %v454
        %v464 = vor.u32 %v462, %v463
        %v465 = vshll.u32 2102212464, %v453
        %v466 = vshrl.u32 920167782, %v454
        %v467 = vor.u32 %v465, %v466
        %v468 = vshll.u32 920167782, %v453
        %v469 = vshrl.u32 1326507024, %v454
        %v470 = vor.u32 %v468, %v469
        %vm471 = vcmp.lt.s32.totalorder %v452, 1
        %vm472 = vcmp.lt.s32.totalorder %v452, 2
        %vm473 = vcmp.lt.s32.totalorder %v452, 3
        %vm474 = vcmp.lt.s32.totalorder %v452, 4
        %v475 = vsel %vm471, %v455, %v458
        %v476 = vsel %vm474, %v464, 2102212464
        %v477 = vsel %vm473, %v461, %v476
        %v478 = vsel %vm472, %v475, %v477
        %v479 = vsel %vm471, %v458, %v461
        %v480 = vsel %vm474, %v467, 920167782
        %v481 = vsel %vm473, %v464, %v480
        %v482 = vsel %vm472, %v479, %v481
        %v483 = vsel %vm471, %v461, %v464
        %v484 = vsel %vm474, %v470, 1326507024
        %v485 = vsel %vm473, %v467, %v484
        %v486 = vsel %vm472, %v483, %v485
        %v487 = vshll.u32 %v447, 8
        %v488 = vmul.u32.u64.compose %v487, %v486
        %v489 = vextract.low.u32 %v488
        %v490 = vextract.high.u32 %v488
        %v491 = vmul.u32.u64.compose %v487, %v482
        %v492 = vextract.low.u32 %v491
        %v493 = vextract.high.u32 %v491
        %v494 = vmul.u32 %v487, %v478
        %v495 = vadd.s32 %v490, %v492
        %vm496 = vc.u32 %v490, %v492
        %v497 = vadd.s32 %v493, 1
        %v498 = vsel %vm496, %v497, %v493
        %v499 = vadd.s32 %v494, %v498
        %v500 = vadd.s32 %v499, 536870912
        %v501 = vshrl.u32 %v500, 30
        %v502 = vshll.u32 %v501, 30
        %v503 = vsub.s32 %v499, %v502
        %vm504 = vcmp.lt.s32.totalorder %v503, 0
        %v505 = vsub.s32 0, %v503
        %v506 = vsel %vm504, %v505, %v503
        %v507 = vclz %v506
        %v508 = vsub.s32 %v507, 2
        %vm509 = vcmp.gt.s32.totalorder 0, %v508
        %v510 = vsel %vm509, 0, %v508
        %v511 = vsub.s32 32, %v510
        %v512 = vshll.u32 %v503, %v510
        %v513 = vshrl.u32 %v495, %v511
        %v514 = vor.u32 %v512, %v513
        %v515 = vsub.s32 4294967266, %v510
        %v516 = vadd.s32 %v515, 127
        %v517 = vshll.u32 %v516, 23
        %v518 = vor.u32 4788187, %v517
        %v519 = vand.u32 2147483647, %v518
        %v521 = vcvt.s32.f32 %v514
        %v522 = vmul.f32 %v521, %v519
        %v523 = vxor.u32 %v522, 2147483648
        %v524 = vsel %vm441, %v523, %v522
        %v525 = vsub.s32 4, %v501
        %v526 = vsel %vm441, %v525, %v501
        %v527 = vsel %vm440, %v438, %v524
        %v528 = vsel %vm440, 0, %v526
        %v529 = vcosq.f32.pop %v527
        %v530 = vsinq.f32.pop %v527
        %vm531 = vweird.f32 %v438
        %v532 = vadd.s32 %v528, 3
        %v533 = vand.u32 %v532, 3
        %vm534 = vcmp.lt.s32.totalorder %v533, 2
        %vm535 = vcmp.eq.s32.totalorder %v533, 0
        %v536 = vxor.u32 %v530, 2147483648
        %v537 = vsel %vm535, %v529, %v536
        %vm538 = vcmp.eq.s32.totalorder %v533, 2
        %v539 = vxor.u32 %v529, 2147483648
        %v540 = vsel %vm538, %v539, %v530
        %v541 = vsel %vm534, %v537, %v540
        %v542 = vsel %vm531, nan, %v541
        %v543 = vmul.f32 %v542, %v542
        %545 = vset.pattern.permute.xlu0 0
        %546 = vperm.xlu0 %545, %v401
        %v547 = vpop.permute.xlu0 %546
        %v549 = vmul.f32 %v547, %v543
        %v550 = vadd.f32 %v432, %v549
        %v551 = vsel %vm389, %v550, 0.0
        // Predicated region
        $region53: #{tpu_custom_call.1} parent=43 // pred_check
          %p552 = pneg %p390
        $region54: #{tpu_custom_call.1} parent=43 // pred_check_branch
          %554 = sbr.rel (%p552) target = $region56
        $region55: #{tpu_custom_call.1} parent=43 // pred_region
          %555 = vrot.lane.b32.xlu0 %v551, 1
          %v556 = vpop.permute.xlu0 %555
          %557 = vrot.lane.b32.xlu0 %v551, 127
          %v558 = vpop.permute.xlu0 %557
          %vm559 = vcmp.lt.s32.totalorder %v388, 1
          %v560 = vsel %vm559, 0.0, %v556
          %561 = vst [vmem:[#allocation2] sm:$0xff] %v560
          %562 = vst [vmem:[#allocation2 + $0x8] sm:$0xff] %v551
          %vm563 = vcmp.ge.s32.totalorder %v388, 63
          %v564 = vsel %vm563, 0.0, %v558
          %565 = vst [vmem:[#allocation2 + $0x10] sm:$0xff] %v564
        $region56: #{tpu_custom_call.1} parent=43 // pred_fallthru
          _
        %p566 = scmp.eq.s32.totalorder %s28, 1
        // Predicated region
        $region57: #{tpu_custom_call.1} parent=43 // pred_check
          %p567 = pneg %p566
        $region58: #{tpu_custom_call.1} parent=43 // pred_check_branch
          %569 = sbr.rel (%p567) target = $region60
        $region59: #{tpu_custom_call.1} parent=43 // pred_region
          %570 = vrot.lane.b32.xlu0 %v551, 3
          %v571 = vpop.permute.xlu0 %570
          %572 = vrot.lane.b32.xlu0 %v551, 125
          %v573 = vpop.permute.xlu0 %572
          %vm574 = vcmp.lt.s32.totalorder %v388, 3
          %v575 = vsel %vm574, 0.0, %v571
          %576 = vst [vmem:[#allocation2] sm:$0xff] %v575
          %577 = vst [vmem:[#allocation2 + $0x8] sm:$0xff] %v551
          %vm578 = vcmp.ge.s32.totalorder %v388, 61
          %v579 = vsel %vm578, 0.0, %v573
          %580 = vst [vmem:[#allocation2 + $0x10] sm:$0xff] %v579
        $region60: #{tpu_custom_call.1} parent=43 // pred_fallthru
          _
        %p581 = scmp.eq.s32.totalorder %s28, 2
        // Predicated region
        $region61: #{tpu_custom_call.1} parent=43 // pred_check
          %p582 = pneg %p581
        $region62: #{tpu_custom_call.1} parent=43 // pred_check_branch
          %584 = sbr.rel (%p582) target = $region64
        $region63: #{tpu_custom_call.1} parent=43 // pred_region
          %585 = vrot.lane.b32.xlu0 %v551, 5
          %v586 = vpop.permute.xlu0 %585
          %587 = vrot.lane.b32.xlu0 %v551, 123
          %v588 = vpop.permute.xlu0 %587
          %vm589 = vcmp.lt.s32.totalorder %v388, 5
          %v590 = vsel %vm589, 0.0, %v586
          %591 = vst [vmem:[#allocation2] sm:$0xff] %v590
          %592 = vst [vmem:[#allocation2 + $0x8] sm:$0xff] %v551
          %vm593 = vcmp.ge.s32.totalorder %v388, 59
          %v594 = vsel %vm593, 0.0, %v588
          %595 = vst [vmem:[#allocation2 + $0x10] sm:$0xff] %v594
        $region64: #{tpu_custom_call.1} parent=43 // pred_fallthru
          _
        %v596 = vld [vmem:[%s372] sm:$0xff]
        %v597 = vld [vmem:[#allocation2] sm:$0xff]
        %v598 = vld [vmem:[#allocation2 + $0x8] sm:$0xff]
        %v599 = vld [vmem:[#allocation2 + $0x10] sm:$0xff]
        %601 = vset.pattern.permute.xlu0 0
        %602 = vperm.xlu0 %601, %v404
        %v603 = vpop.permute.xlu0 %602
        %vm605 = vcmask 195584
        %v607 = vsel %vm605, %v596, 0
        %609 = vmatprep.subr.mxu0 0.0
        %610 = vmatpush1.msra.mxu0 %v597
        %611 = vmatprep.subr.mxu0 0.0
        %612 = vmatpush1.msra.mxu0 %v598
        %613 = vmatprep.subr.mxu0 0.0
        %614 = vmatpush1.msra.mxu0 %v599
        %615 = vmatprep.subr.mxu0 0.0
        %616 = vmatpush1.msra.mxu0 0.0
        %617 = vmatprep.subr.mxu0 0.0
        %618 = vmatpush1.msra.mxu0 0.0
        %619 = vmatprep.subr.mxu0 0.0
        %620 = vmatpush1.msra.mxu0 0.0
        %621 = vmatprep.subr.mxu0 0.0
        %622 = vmatpush1.msra.mxu0 0.0
        %623 = vmatprep.subr.mxu0 0.0
        %624 = vmatpush1.msra.mxu0 0.0
        %625 = vmatprep.subr.mxu0 0.0
        %626 = vmatpush1.msra.mxu0 0.0
        %627 = vmatprep.subr.mxu0 0.0
        %628 = vmatpush1.msra.mxu0 0.0
        %629 = vmatprep.subr.mxu0 0.0
        %630 = vmatpush1.msra.mxu0 0.0
        %631 = vmatprep.subr.mxu0 0.0
        %632 = vmatpush1.msra.mxu0 0.0
        %633 = vmatprep.subr.mxu0 0.0
        %634 = vmatpush1.msra.mxu0 0.0
        %635 = vmatprep.subr.mxu0 0.0
        %636 = vmatpush1.msra.mxu0 0.0
        %637 = vmatprep.subr.mxu0 0.0
        %638 = vmatpush1.msra.mxu0 0.0
        %639 = vmatprep.subr.mxu0 0.0
        %640 = vmatpush1.msra.mxu0 0.0
        %641 = vmatprep.subr.mxu0 0.0
        %642 = vmatpush1.msra.mxu0 0.0
        %643 = vmatprep.subr.mxu0 0.0
        %644 = vmatpush1.msra.mxu0 0.0
        %645 = vmatprep.subr.mxu0 0.0
        %646 = vmatpush1.msra.mxu0 0.0
        %647 = vmatprep.subr.mxu0 0.0
        %648 = vmatpush1.msra.mxu0 0.0
        %649 = vmatprep.subr.mxu0 0.0
        %650 = vmatpush1.msra.mxu0 0.0
        %651 = vmatprep.subr.mxu0 0.0
        %652 = vmatpush1.msra.mxu0 0.0
        %653 = vmatprep.subr.mxu0 0.0
        %654 = vmatpush1.msra.mxu0 0.0
        %655 = vmatprep.subr.mxu0 0.0
        %656 = vmatpush1.msra.mxu0 0.0
        %657 = vmatprep.subr.mxu0 0.0
        %658 = vmatpush1.msra.mxu0 0.0
        %659 = vmatprep.subr.mxu0 0.0
        %660 = vmatpush1.msra.mxu0 0.0
        %661 = vmatprep.subr.mxu0 0.0
        %662 = vmatpush1.msra.mxu0 0.0
        %663 = vmatprep.subr.mxu0 0.0
        %664 = vmatpush1.msra.mxu0 0.0
        %665 = vmatprep.subr.mxu0 0.0
        %666 = vmatpush1.msra.mxu0 0.0
        %667 = vmatprep.subr.mxu0 0.0
        %668 = vmatpush1.msra.mxu0 0.0
        %669 = vmatprep.subr.mxu0 0.0
        %670 = vmatpush1.msra.mxu0 0.0
        %671 = vmatprep.subr.mxu0 0.0
        %672 = vmatpush1.msra.mxu0 0.0
        %673 = vmatprep.mubr.f32.mxu0 0.0
        %674 = vmatmul.mubr.f32.gmra.mrb[0].mxu0 %v607
        %v675 = vpop.f32.mrb[0].mxu0
        %v676 = vadd.f32 %v603, %v675
        %v677 = vpop.f32.mrb[0].mxu0
        %678 = vdwg.mxu0
        %v679 = vsel %vm389, %v676, 0.0
        %680 = vadd.xlane.f32.xlu0 %v679
        %v681 = vpop.xlane.xlu0 %680
        %v682 = vmul.f32 %v681, 0.015625
        %v683 = vsub.f32 %v676, %v682
        %v684 = vsel %vm389, %v683, 0.0
        %v685 = vmul.f32 %v684, %v684
        %686 = vadd.xlane.f32.xlu0 %v685
        %v687 = vpop.xlane.xlu0 %686
        %v688 = vmul.f32 %v687, 0.015625
        %v689 = vadd.f32 %v398, 1.0
        %v690 = vadd.f32 %v688, 1e-05
        %v691 = vrsqrt.pop %v690
        %v692 = vmul.f32 %v689, %v691
        %694 = vset.pattern.permute.xlu0 0
        %695 = vperm.xlu0 %694, %v692
        %v696 = vpop.permute.xlu0 %695
        %v698 = vmul.f32 %v696, %v683
        %700 = vset.pattern.permute.xlu0 0
        %701 = vperm.xlu0 %700, %v399
        %v702 = vpop.permute.xlu0 %701
        %v704 = vadd.f32 %v698, %v702
        %706 = vset.pattern.permute.xlu0 0
        %707 = vperm.xlu0 %706, %v402
        %v708 = vpop.permute.xlu0 %707
        %v710 = vmul.f32 %v708, %v704
        %v711 = vand.u32 2147483647, %v710
        %vm712 = vcmp.le.f32.partialorder %v711, 0.7853982
        %vm713 = vcmp.lt.s32.totalorder %v710, 0
        %v714 = vand.u32 %v710, 2139095040
        %v715 = vshrl.u32 %v714, 23
        %v716 = vsub.s32 %v715, 127
        %v717 = vand.u32 2147483647, %v710
        %v718 = vand.u32 %v717, 8388607
        %v719 = vor.u32 %v718, 8388608
        %v720 = vsub.s32 0, %v719
        %v721 = vadd.s32 %v716, 1
        %vm722 = vcmp.gt.s32.totalorder %v721, 0
        %v723 = vsel %vm722, %v721, 0
        %v724 = vshrl.u32 %v723, 5
        %v725 = vand.u32 %v723, 31
        %v726 = vsub.s32 32, %v725
        %v727 = vshrl.u32 683565275, %v726
        %v728 = vshll.u32 683565275, %v725
        %v729 = vshrl.u32 2475754826, %v726
        %v730 = vor.u32 %v728, %v729
        %v731 = vshll.u32 2475754826, %v725
        %v732 = vshrl.u32 2131351028, %v726
        %v733 = vor.u32 %v731, %v732
        %v734 = vshll.u32 2131351028, %v725
        %v735 = vshrl.u32 2102212464, %v726
        %v736 = vor.u32 %v734, %v735
        %v737 = vshll.u32 2102212464, %v725
        %v738 = vshrl.u32 920167782, %v726
        %v739 = vor.u32 %v737, %v738
        %v740 = vshll.u32 920167782, %v725
        %v741 = vshrl.u32 1326507024, %v726
        %v742 = vor.u32 %v740, %v741
        %vm743 = vcmp.lt.s32.totalorder %v724, 1
        %vm744 = vcmp.lt.s32.totalorder %v724, 2
        %vm745 = vcmp.lt.s32.totalorder %v724, 3
        %vm746 = vcmp.lt.s32.totalorder %v724, 4
        %v747 = vsel %vm743, %v727, %v730
        %v748 = vsel %vm746, %v736, 2102212464
        %v749 = vsel %vm745, %v733, %v748
        %v750 = vsel %vm744, %v747, %v749
        %v751 = vsel %vm743, %v730, %v733
        %v752 = vsel %vm746, %v739, 920167782
        %v753 = vsel %vm745, %v736, %v752
        %v754 = vsel %vm744, %v751, %v753
        %v755 = vsel %vm743, %v733, %v736
        %v756 = vsel %vm746, %v742, 1326507024
        %v757 = vsel %vm745, %v739, %v756
        %v758 = vsel %vm744, %v755, %v757
        %v759 = vshll.u32 %v719, 8
        %v760 = vmul.u32.u64.compose %v759, %v758
        %v761 = vextract.low.u32 %v760
        %v762 = vextract.high.u32 %v760
        %v763 = vmul.u32.u64.compose %v759, %v754
        %v764 = vextract.low.u32 %v763
        %v765 = vextract.high.u32 %v763
        %v766 = vmul.u32 %v759, %v750
        %v767 = vadd.s32 %v762, %v764
        %vm768 = vc.u32 %v762, %v764
        %v769 = vadd.s32 %v765, 1
        %v770 = vsel %vm768, %v769, %v765
        %v771 = vadd.s32 %v766, %v770
        %v772 = vadd.s32 %v771, 536870912
        %v773 = vshrl.u32 %v772, 30
        %v774 = vshll.u32 %v773, 30
        %v775 = vsub.s32 %v771, %v774
        %vm776 = vcmp.lt.s32.totalorder %v775, 0
        %v777 = vsub.s32 0, %v775
        %v778 = vsel %vm776, %v777, %v775
        %v779 = vclz %v778
        %v780 = vsub.s32 %v779, 2
        %vm781 = vcmp.gt.s32.totalorder 0, %v780
        %v782 = vsel %vm781, 0, %v780
        %v783 = vsub.s32 32, %v782
        %v784 = vshll.u32 %v775, %v782
        %v785 = vshrl.u32 %v767, %v783
        %v786 = vor.u32 %v784, %v785
        %v787 = vsub.s32 4294967266, %v782
        %v788 = vadd.s32 %v787, 127
        %v789 = vshll.u32 %v788, 23
        %v790 = vor.u32 4788187, %v789
        %v791 = vand.u32 2147483647, %v790
        %v793 = vcvt.s32.f32 %v786
        %v794 = vmul.f32 %v793, %v791
        %v795 = vxor.u32 %v794, 2147483648
        %v796 = vsel %vm713, %v795, %v794
        %v797 = vsub.s32 4, %v773
        %v798 = vsel %vm713, %v797, %v773
        %v799 = vsel %vm712, %v710, %v796
        %v800 = vsel %vm712, 0, %v798
        %v801 = vcosq.f32.pop %v799
        %v802 = vsinq.f32.pop %v799
        %vm803 = vweird.f32 %v710
        %v804 = vadd.s32 %v800, 3
        %v805 = vand.u32 %v804, 3
        %vm806 = vcmp.lt.s32.totalorder %v805, 2
        %vm807 = vcmp.eq.s32.totalorder %v805, 0
        %v808 = vxor.u32 %v802, 2147483648
        %v809 = vsel %vm807, %v801, %v808
        %vm810 = vcmp.eq.s32.totalorder %v805, 2
        %v811 = vxor.u32 %v801, 2147483648
        %v812 = vsel %vm810, %v811, %v802
        %v813 = vsel %vm806, %v809, %v812
        %v814 = vsel %vm803, nan, %v813
        %v815 = vmul.f32 %v814, %v814
        %817 = vset.pattern.permute.xlu0 0
        %818 = vperm.xlu0 %817, %v403
        %v819 = vpop.permute.xlu0 %818
        %v821 = vmul.f32 %v819, %v815
        %v822 = vadd.f32 %v704, %v821
        %v823 = vsel %vm389, %v822, 0.0
        %824 = vrot.lane.b32.xlu0 %v823, 1
        %v825 = vpop.permute.xlu0 %824
        %826 = vrot.lane.b32.xlu0 %v823, 127
        %v827 = vpop.permute.xlu0 %826
        %vm828 = vcmp.lt.s32.totalorder %v388, 1
        %v829 = vsel %vm828, 0.0, %v825
        %830 = vst [vmem:[#allocation2] sm:$0xff] %v829
        %831 = vst [vmem:[#allocation2 + $0x8] sm:$0xff] %v823
        %vm832 = vcmp.ge.s32.totalorder %v388, 63
        %v833 = vsel %vm832, 0.0, %v827
        %834 = vst [vmem:[#allocation2 + $0x10] sm:$0xff] %v833
        %v835 = vld [vmem:[%s376] sm:$0xff]
        %v836 = vld [vmem:[#allocation2] sm:$0xff]
        %v837 = vld [vmem:[#allocation2 + $0x8] sm:$0xff]
        %v838 = vld [vmem:[#allocation2 + $0x10] sm:$0xff]
        %840 = vset.pattern.permute.xlu0 0
        %841 = vperm.xlu0 %840, %v405
        %v842 = vpop.permute.xlu0 %841
        %v845 = vsel %vm605, %v835, 0
        %847 = vmatprep.subr.mxu0 0.0
        %848 = vmatpush1.msra.mxu0 %v836
        %849 = vmatprep.subr.mxu0 0.0
        %850 = vmatpush1.msra.mxu0 %v837
        %851 = vmatprep.subr.mxu0 0.0
        %852 = vmatpush1.msra.mxu0 %v838
        %853 = vmatprep.subr.mxu0 0.0
        %854 = vmatpush1.msra.mxu0 0.0
        %855 = vmatprep.subr.mxu0 0.0
        %856 = vmatpush1.msra.mxu0 0.0
        %857 = vmatprep.subr.mxu0 0.0
        %858 = vmatpush1.msra.mxu0 0.0
        %859 = vmatprep.subr.mxu0 0.0
        %860 = vmatpush1.msra.mxu0 0.0
        %861 = vmatprep.subr.mxu0 0.0
        %862 = vmatpush1.msra.mxu0 0.0
        %863 = vmatprep.subr.mxu0 0.0
        %864 = vmatpush1.msra.mxu0 0.0
        %865 = vmatprep.subr.mxu0 0.0
        %866 = vmatpush1.msra.mxu0 0.0
        %867 = vmatprep.subr.mxu0 0.0
        %868 = vmatpush1.msra.mxu0 0.0
        %869 = vmatprep.subr.mxu0 0.0
        %870 = vmatpush1.msra.mxu0 0.0
        %871 = vmatprep.subr.mxu0 0.0
        %872 = vmatpush1.msra.mxu0 0.0
        %873 = vmatprep.subr.mxu0 0.0
        %874 = vmatpush1.msra.mxu0 0.0
        %875 = vmatprep.subr.mxu0 0.0
        %876 = vmatpush1.msra.mxu0 0.0
        %877 = vmatprep.subr.mxu0 0.0
        %878 = vmatpush1.msra.mxu0 0.0
        %879 = vmatprep.subr.mxu0 0.0
        %880 = vmatpush1.msra.mxu0 0.0
        %881 = vmatprep.subr.mxu0 0.0
        %882 = vmatpush1.msra.mxu0 0.0
        %883 = vmatprep.subr.mxu0 0.0
        %884 = vmatpush1.msra.mxu0 0.0
        %885 = vmatprep.subr.mxu0 0.0
        %886 = vmatpush1.msra.mxu0 0.0
        %887 = vmatprep.subr.mxu0 0.0
        %888 = vmatpush1.msra.mxu0 0.0
        %889 = vmatprep.subr.mxu0 0.0
        %890 = vmatpush1.msra.mxu0 0.0
        %891 = vmatprep.subr.mxu0 0.0
        %892 = vmatpush1.msra.mxu0 0.0
        %893 = vmatprep.subr.mxu0 0.0
        %894 = vmatpush1.msra.mxu0 0.0
        %895 = vmatprep.subr.mxu0 0.0
        %896 = vmatpush1.msra.mxu0 0.0
        %897 = vmatprep.subr.mxu0 0.0
        %898 = vmatpush1.msra.mxu0 0.0
        %899 = vmatprep.subr.mxu0 0.0
        %900 = vmatpush1.msra.mxu0 0.0
        %901 = vmatprep.subr.mxu0 0.0
        %902 = vmatpush1.msra.mxu0 0.0
        %903 = vmatprep.subr.mxu0 0.0
        %904 = vmatpush1.msra.mxu0 0.0
        %905 = vmatprep.subr.mxu0 0.0
        %906 = vmatpush1.msra.mxu0 0.0
        %907 = vmatprep.subr.mxu0 0.0
        %908 = vmatpush1.msra.mxu0 0.0
        %909 = vmatprep.subr.mxu0 0.0
        %910 = vmatpush1.msra.mxu0 0.0
        %911 = vmatprep.mubr.f32.mxu0 0.0
        %912 = vmatmul.mubr.f32.gmra.mrb[0].mxu0 %v845
        %v913 = vpop.f32.mrb[0].mxu0
        %v914 = vadd.f32 %v842, %v913
        %v915 = vpop.f32.mrb[0].mxu0
        %916 = vdwg.mxu0
        %v917 = vsel %vm389, %v914, 0.0
        %v918 = vld [vmem:[%s359] sm:$0xff]
        %v919 = vadd.f32 %v918, %v917
        %920 = vst [vmem:[%s359] sm:$0xff] %v919
        %s921 = sand.u32 %s201, 1
        %s922 = scalar_lea.sflag [#allocation5], %s921
        %s923 = sand.u32 %s201, 1
        %s924 = smul.addr %s923, 8
        %s925 = scalar_lea.vmem [#allocation6], %s924
        // Predicated region
        $region65: #{tpu_custom_call.1} parent=43 // pred_check
          %p926 = pneg %p211
        $region66: #{tpu_custom_call.1} parent=43 // pred_check_branch
          %928 = sbr.rel (%p926) target = $region68
        $region67: #{tpu_custom_call.1} parent=43 // pred_region
          %s930 = ssub.s32 128, 128
          %931 = vsyncadd %s922, %s930
          %s932 = smul.addr %s27, 128
          %s933 = scalar_lea.hbm %s6, %s932
          %s935 = sshll.u32 %s925, 4
          %s936 = int_to_ptr.vmem [resolvable:$true] %s935
          %938 = dma.vmem_to_hbm [thread:$0]  %s936, 128, %s933, %s922
        $region68: #{tpu_custom_call.1} parent=43 // pred_fallthru
          _
      $region44: #{tpu_custom_call.1} parent=5 // pred_fallthru
        _
      %p939 = scmp.le.s32.totalorder 2, %s18
      // Predicated region
      $region69: #{tpu_custom_call.1} parent=5 // pred_check
        %p940 = pneg %p939
      $region70: #{tpu_custom_call.1} parent=5 // pred_check_branch
        %942 = sbr.rel (%p940) target = $region72
      $region71: #{tpu_custom_call.1} parent=5 // pred_region
        %s943 = ssub.s32 %s18, 2
        // Predicated region
        $region73: #{tpu_custom_call.1} parent=71 // pred_check
          %p944 = pneg %p217
        $region74: #{tpu_custom_call.1} parent=71 // pred_check_branch
          %946 = sbr.rel (%p944) target = $region76
        $region75: #{tpu_custom_call.1} parent=71 // pred_region
          %s947 = sand.u32 %s202, 1
          %s948 = scalar_lea.sflag [#allocation5], %s947
          %s949 = sand.u32 %s202, 1
          %s950 = smul.addr %s949, 8
          %s951 = scalar_lea.vmem [#allocation6], %s950
          %952 = dma.done %s948, 128
        $region76: #{tpu_custom_call.1} parent=71 // pred_fallthru
          _
      $region72: #{tpu_custom_call.1} parent=5 // pred_fallthru
        _
    $region6: #{tpu_custom_call.1} parent=1 // loop_footer
      %s22 = sadd.s32 1, %s18
    $region7: #{tpu_custom_call.1} parent=1 // loop_footer_branch
      %17 = sbr.rel target = $region3
    $region8: #{tpu_custom_call.1} parent=1 // loop_exit
      _
    %953 = vsyncpa [#allocation4], 1
    %s954 = scalar_lea.sflag [#allocation4], 1
    %955 = vsyncpa %s954, 1
    %956 = vsyncpa [#allocation5], 1
    %s957 = scalar_lea.sflag [#allocation5], 1
    %958 = vsyncpa %s957, 1

</llo_original>
